<compile_context>
chip_gen: v7x
topology: tpu7x:2x2x1
jax: 0.10.0
libtpu: 0.0.40
codegen_flags: <defaults>
</compile_context>

<pallas_src>
import math

import jax
import jax.numpy as jnp
from jax import lax
from jax.experimental import pallas as pl
from jax.experimental.pallas import tpu as pltpu


def _make_gcn_kernel(batch_block, contract_w_first):
    """Kernel over one batch block: x (Bb,F,N), A (Bb,N,N), W (F,O) -> (Bb,O,N)."""

    def kernel(x_ref, a_ref, w_ref, o_ref):
        w = w_ref[...]  # hoisted once per grid step, shared across the batch block
        for b in range(batch_block):  # static unroll; 2 MXU dots per batch element
            x = x_ref[b]  # (F, N)
            a = a_ref[b]  # (N, N)
            if contract_w_first:
                # y = W^T @ x  -> (O, N);  out = y @ A^T -> (O, N)
                y = lax.dot_general(
                    w, x, (((0,), (0,)), ((), ())),
                    preferred_element_type=jnp.float32)
                out = lax.dot_general(
                    y, a, (((1,), (1,)), ((), ())),
                    preferred_element_type=jnp.float32)
            else:
                # tmp = A @ x^T -> (N, F);  out = W^T @ tmp^T -> (O, N)
                tmp = lax.dot_general(
                    a, x, (((1,), (1,)), ((), ())),
                    preferred_element_type=jnp.float32)
                out = lax.dot_general(
                    w, tmp, (((0,), (1,)), ((), ())),
                    preferred_element_type=jnp.float32)
            o_ref[b] = out.astype(o_ref.dtype)

    return kernel


def _choose_batch_block(B, F, N, O, itemsize, vmem_budget_bytes=16 << 20):
    """Largest divisor of B whose double-buffered block footprint fits the budget."""
    per_b = (F * N + N * N + O * N) * itemsize
    max_bb = max(1, vmem_budget_bytes // max(1, 2 * per_b))
    bb = int(min(B, max_bb, 32))
    while B % bb != 0:
        bb -= 1
    return max(1, bb)


def graph_gcn_forward(x, A, weight, *, batch_block=None):
    """x: (B, F, N), A: (B, N, N), weight: (F, O) -> (B, O, N)."""
    B, F, N = x.shape
    F_w, O = weight.shape
    assert A.shape == (B, N, N)
    assert F_w == F

    itemsize = jnp.dtype(x.dtype).itemsize
    if batch_block is None:
        batch_block = _choose_batch_block(B, F, N, O, itemsize)
    Bb = batch_block
    assert B % Bb == 0, "batch_block must divide batch size"

    # Put the smaller of F/O on the N^2-scaled contraction.
    contract_w_first = O < F
    kernel = _make_gcn_kernel(Bb, contract_w_first)

    block_bytes = (Bb * (F * N + N * N + O * N) + F * O) * itemsize
    # Explicit scoped-VMEM limit: generous for the double-buffered blocks, but
    # capped at 64 MiB so it is valid on v7x as well as v5e/v6e.
    vmem_limit = int(min(64 << 20, max(32 << 20, 4 * block_bytes)))

    grid_spec = pl.GridSpec(
        grid=(B // Bb,),
        in_specs=[
            pl.BlockSpec((Bb, F, N), lambda i: (i, 0, 0)),  # x batch block
            pl.BlockSpec((Bb, N, N), lambda i: (i, 0, 0)),  # A batch block
            pl.BlockSpec((F, O), lambda i: (0, 0)),          # shared weight
        ],
        out_specs=pl.BlockSpec((Bb, O, N), lambda i: (i, 0, 0)),
    )

    return pl.pallas_call(
        kernel,
        out_shape=jax.ShapeDtypeStruct((B, O, N), x.dtype),
        grid_spec=grid_spec,
        compiler_params=pltpu.CompilerParams(
            dimension_semantics=("parallel",),
            vmem_limit_bytes=vmem_limit,
        ),
    )(x, A, weight)


def init_weight(key, feature_size, output_size):
    # Mirrors nn.init.kaiming_uniform_ (a=0, leaky_relu, fan_in = output_size):
    # bound = sqrt(6 / fan_in)
    bound = math.sqrt(6.0 / output_size)
    return jax.random.uniform(
        key, (feature_size, output_size), dtype=jnp.float32,
        minval=-bound, maxval=bound,
    )


def _reference(x, A, W):
    ref = jnp.einsum("bnm,bfm->bnf", A, x)   # A @ x.transpose(1, 2)
    ref = jnp.einsum("bnf,fo->bno", ref, W)  # ... @ W
    return jnp.transpose(ref, (0, 2, 1))     # .transpose(1, 2)


if __name__ == "__main__":
    B = 2
    node_size = 16
    feature_size = 8
    output_size = 32

    key = jax.random.PRNGKey(0)
    kx, ka, kw = jax.random.split(key, 3)

    x = jax.random.normal(kx, (B, feature_size, node_size), dtype=jnp.float32)
    A = jax.random.normal(ka, (B, node_size, node_size), dtype=jnp.float32)
    W = init_weight(kw, feature_size, output_size)

    out = graph_gcn_forward(x, A, W)
    out = jax.block_until_ready(out)

    assert out.shape == (B, output_size, node_size)
    assert jnp.allclose(out, _reference(x, A, W), atol=1e-4, rtol=1e-4)

    # Also exercise the O < F contraction order (W^T @ x first).
    F2, O2 = 32, 8
    x2 = jax.random.normal(kx, (B, F2, node_size), dtype=jnp.float32)
    W2 = init_weight(kw, F2, O2)
    out2 = jax.block_until_ready(graph_gcn_forward(x2, A, W2))
    assert out2.shape == (B, O2, node_size)
    assert jnp.allclose(out2, _reference(x2, A, W2), atol=1e-4, rtol=1e-4)

    print("KERNEL_OK")
</pallas_src>

<mosaic_0001>
module attributes {stable_mosaic.version = 11 : i64} {
  func.func @kernel(%arg0: i32, %arg1: memref<2x8x16xf32, #tpu.memory_space<vmem>>, %arg2: memref<2x16x16xf32, #tpu.memory_space<vmem>>, %arg3: memref<8x32xf32, #tpu.memory_space<vmem>>, %arg4: memref<2x32x16xf32, #tpu.memory_space<vmem>>) attributes {dimension_semantics = [#tpu.dimension_semantics<parallel>], iteration_bounds = array<i64: 1>, scalar_prefetch = 0 : i64, scratch_operands = 0 : i64, tpu.core_type = #tpu.core_type<tc>, window_params = [{transform_indices = @transform_0, window_bounds = array<i64: 2, 8, 16>}, {transform_indices = @transform_1, window_bounds = array<i64: 2, 16, 16>}, {pipeline_mode = #tpu.pipeline_mode<synchronous>, transform_indices = @transform_2, window_bounds = array<i64: 8, 32>}, {transform_indices = @transform_3, window_bounds = array<i64: 2, 32, 16>}]} {
    %c0 = arith.constant 0 : index
    %c0_0 = arith.constant 0 : index
    %0 = vector.load %arg3[%c0, %c0_0] : memref<8x32xf32, #tpu.memory_space<vmem>>, vector<8x32xf32>
    %c0_1 = arith.constant 0 : index
    %c0_2 = arith.constant 0 : index
    %c0_3 = arith.constant 0 : index
    %1 = vector.load %arg1[%c0_1, %c0_2, %c0_3] : memref<2x8x16xf32, #tpu.memory_space<vmem>>, vector<1x8x16xf32>
    %2 = vector.shape_cast %1 : vector<1x8x16xf32> to vector<8x16xf32>
    %c0_4 = arith.constant 0 : index
    %c0_5 = arith.constant 0 : index
    %c0_6 = arith.constant 0 : index
    %3 = vector.load %arg2[%c0_4, %c0_5, %c0_6] : memref<2x16x16xf32, #tpu.memory_space<vmem>>, vector<1x16x16xf32>
    %4 = vector.shape_cast %3 : vector<1x16x16xf32> to vector<16x16xf32>
    %cst = arith.constant dense<0.000000e+00> : vector<16x8xf32>
    %5 = tpu.matmul %4, %2, %cst {dimension_numbers = #tpu.dot_dimension_numbers<[1], [1], [0], [0], [0, 0, 1, 0], [], []>} : vector<16x16xf32>, vector<8x16xf32>, vector<16x8xf32> -> vector<16x8xf32>
    %cst_7 = arith.constant dense<0.000000e+00> : vector<32x16xf32>
    %6 = tpu.matmul %0, %5, %cst_7 {dimension_numbers = #tpu.dot_dimension_numbers<[0], [1], [1], [0], [0, 1, 1, 0], [], []>} : vector<8x32xf32>, vector<16x8xf32>, vector<32x16xf32> -> vector<32x16xf32>
    %c0_8 = arith.constant 0 : index
    %c0_9 = arith.constant 0 : index
    %c0_10 = arith.constant 0 : index
    %7 = vector.load %arg4[%c0_8, %c0_9, %c0_10] : memref<2x32x16xf32, #tpu.memory_space<vmem>>, vector<1x32x16xf32>
    %8 = vector.shape_cast %7 : vector<1x32x16xf32> to vector<32x16xf32>
    %9 = vector.shape_cast %6 : vector<32x16xf32> to vector<1x32x16xf32>
    tpu.vector_store %arg4[%c0_8, %c0_9, %c0_10], %9 {strides = array<i32>} : memref<2x32x16xf32, #tpu.memory_space<vmem>>, vector<1x32x16xf32>,
    %c1 = arith.constant 1 : index
    %c0_11 = arith.constant 0 : index
    %c0_12 = arith.constant 0 : index
    %10 = vector.load %arg1[%c1, %c0_11, %c0_12] : memref<2x8x16xf32, #tpu.memory_space<vmem>>, vector<1x8x16xf32>
    %11 = vector.shape_cast %10 : vector<1x8x16xf32> to vector<8x16xf32>
    %c1_13 = arith.constant 1 : index
    %c0_14 = arith.constant 0 : index
    %c0_15 = arith.constant 0 : index
    %12 = vector.load %arg2[%c1_13, %c0_14, %c0_15] : memref<2x16x16xf32, #tpu.memory_space<vmem>>, vector<1x16x16xf32>
    %13 = vector.shape_cast %12 : vector<1x16x16xf32> to vector<16x16xf32>
    %cst_16 = arith.constant dense<0.000000e+00> : vector<16x8xf32>
    %14 = tpu.matmul %13, %11, %cst_16 {dimension_numbers = #tpu.dot_dimension_numbers<[1], [1], [0], [0], [0, 0, 1, 0], [], []>} : vector<16x16xf32>, vector<8x16xf32>, vector<16x8xf32> -> vector<16x8xf32>
    %cst_17 = arith.constant dense<0.000000e+00> : vector<32x16xf32>
    %15 = tpu.matmul %0, %14, %cst_17 {dimension_numbers = #tpu.dot_dimension_numbers<[0], [1], [1], [0], [0, 1, 1, 0], [], []>} : vector<8x32xf32>, vector<16x8xf32>, vector<32x16xf32> -> vector<32x16xf32>
    %c1_18 = arith.constant 1 : index
    %c0_19 = arith.constant 0 : index
    %c0_20 = arith.constant 0 : index
    %16 = vector.load %arg4[%c1_18, %c0_19, %c0_20] : memref<2x32x16xf32, #tpu.memory_space<vmem>>, vector<1x32x16xf32>
    %17 = vector.shape_cast %16 : vector<1x32x16xf32> to vector<32x16xf32>
    %18 = vector.shape_cast %15 : vector<32x16xf32> to vector<1x32x16xf32>
    tpu.vector_store %arg4[%c1_18, %c0_19, %c0_20], %18 {strides = array<i32>} : memref<2x32x16xf32, #tpu.memory_space<vmem>>, vector<1x32x16xf32>,
    return
  }
  func.func @transform_0(%arg0: i32) -> (i32, i32, i32) {
    %c0_i32 = arith.constant 0 : i32
    %c0_i32_0 = arith.constant 0 : i32
    %c0_i32_1 = arith.constant 0 : i32
    return %arg0, %c0_i32, %c0_i32_0 : i32, i32, i32
  }
  func.func @transform_1(%arg0: i32) -> (i32, i32, i32) {
    %c0_i32 = arith.constant 0 : i32
    %c0_i32_0 = arith.constant 0 : i32
    %c0_i32_1 = arith.constant 0 : i32
    return %arg0, %c0_i32, %c0_i32_0 : i32, i32, i32
  }
  func.func @transform_2(%arg0: i32) -> (i32, i32) {
    %c0_i32 = arith.constant 0 : i32
    %c0_i32_0 = arith.constant 0 : i32
    %c0_i32_1 = arith.constant 0 : i32
    return %c0_i32, %c0_i32_0 : i32, i32
  }
  func.func @transform_3(%arg0: i32) -> (i32, i32, i32) {
    %c0_i32 = arith.constant 0 : i32
    %c0_i32_0 = arith.constant 0 : i32
    %c0_i32_1 = arith.constant 0 : i32
    return %arg0, %c0_i32, %c0_i32_0 : i32, i32, i32
  }
}

</mosaic_0001>

<llo_original>
// kernel: tpu_custom_call.1
$region0: #{tpu_custom_call.1}
  #allocation0 [shape = 'u32[]', space=smem, size = 0x4, offset = 0x4, fixed_abs, tag = 'smem constant byte address 0x4 - core index']
  #allocation1 [shape = 'u32[144,128]{1,0:T(1,128)}', space=vmem, size = 0x12000, scoped, tag = 'internal scratch']
  %s0 = inlined_call_operand.hbm [shape: f32[2,8,16], index: 0, kind: input, shape index: {}]
  %s1 = inlined_call_operand.hbm [shape: f32[2,16,16], index: 1, kind: input, shape index: {}]
  %s2 = inlined_call_operand.hbm [shape: f32[8,32], index: 2, kind: input, shape index: {}]
  %s3 = inlined_call_operand.vmem [shape: f32[2,32,16], index: 3, kind: output, shape index: {}]
  %s4 = sld [smem:[#allocation0]]
  $region34: #{tpu_custom_call.1} parent=0
    _
  %s6 = ssub.s32 1, %s4
  %s7 = scalar_select 0, %s6, %s4
  $region1: #{tpu_custom_call.1} parent=0
    #allocation2 [shape = 'u8[8192]{0}', space=vmem, size = 0x2000, scoped, tag = 'input window, operand 0, single buffered']
    #allocation3 [shape = 's32[1]{0}', space=sflag, size = 0x4, scoped, tag = 'scoped memory for tpu_custom_call.1']
    #allocation4 [shape = 'u8[16384]{0}', space=vmem, size = 0x4000, scoped, tag = 'input window, operand 1, single buffered']
    #allocation5 [shape = 's32[1]{0}', space=sflag, size = 0x4, scoped, tag = 'scoped memory for tpu_custom_call.1']
    #allocation6 [shape = 'u8[4096]{0}', space=vmem, size = 0x1000, scoped, tag = 'input window, operand 2, single buffered']
    %8 = vsyncpa [#allocation3], 0
    %9 = vsyncpa [#allocation5], 0
    // Predicated region
    $region2: #{tpu_custom_call.1} parent=1 // pred_check
      _
    $region3: #{tpu_custom_call.1} parent=1 // pred_check_branch
      %11 = sbr.rel (0) target = $region5
    $region4: #{tpu_custom_call.1} parent=1 // pred_region
      %s13 = ssub.s32 256, 256
      %14 = vsyncadd [#allocation3], %s13
      %s15 = sshll.u32 [#allocation2], 4
      %s16 = int_to_ptr.vmem [resolvable:$true] %s15
      %21 = dma.hbm_to_vmem [thread:$0]  %s0, 256, %s16, [#allocation3], 128, 128, 8
    $region5: #{tpu_custom_call.1} parent=1 // pred_fallthru
      _
    // Predicated region
    $region6: #{tpu_custom_call.1} parent=1 // pred_check
      _
    $region7: #{tpu_custom_call.1} parent=1 // pred_check_branch
      %23 = sbr.rel (0) target = $region9
    $region8: #{tpu_custom_call.1} parent=1 // pred_region
      %s25 = ssub.s32 512, 512
      %26 = vsyncadd [#allocation5], %s25
      %s27 = sshll.u32 [#allocation4], 4
      %s28 = int_to_ptr.vmem [resolvable:$true] %s27
      %33 = dma.hbm_to_vmem [thread:$0]  %s1, 512, %s28, [#allocation5], 128, 128, 8
    $region9: #{tpu_custom_call.1} parent=1 // pred_fallthru
      _
    // Predicated region
    $region10: #{tpu_custom_call.1} parent=1 // pred_check
      _
    $region11: #{tpu_custom_call.1} parent=1 // pred_check_branch
      %35 = sbr.rel (0) target = $region13
    $region12: #{tpu_custom_call.1} parent=1 // pred_region
      %s37 = ssub.s32 128, 128
      %38 = vsyncadd [#allocation5], %s37
      %s40 = sshll.u32 [#allocation6], 4
      %s41 = int_to_ptr.vmem [resolvable:$true] %s40
      %43 = dma.hbm_to_vmem [thread:$0]  %s2, 128, %s41, [#allocation5]
    $region13: #{tpu_custom_call.1} parent=1 // pred_fallthru
      _
    // Predicated region
    $region14: #{tpu_custom_call.1} parent=1 // pred_check
      _
    $region15: #{tpu_custom_call.1} parent=1 // pred_check_branch
      %45 = sbr.rel (0) target = $region17
    $region16: #{tpu_custom_call.1} parent=1 // pred_region
      %46 = dma.done [#allocation3], 256
    $region17: #{tpu_custom_call.1} parent=1 // pred_fallthru
      _
    // Predicated region
    $region18: #{tpu_custom_call.1} parent=1 // pred_check
      _
    $region19: #{tpu_custom_call.1} parent=1 // pred_check_branch
      %48 = sbr.rel (0) target = $region21
    $region20: #{tpu_custom_call.1} parent=1 // pred_region
      %49 = dma.done [#allocation5], 512
    $region21: #{tpu_custom_call.1} parent=1 // pred_fallthru
      _
    // Predicated region
    $region22: #{tpu_custom_call.1} parent=1 // pred_check
      _
    $region23: #{tpu_custom_call.1} parent=1 // pred_check_branch
      %51 = sbr.rel (0) target = $region25
    $region24: #{tpu_custom_call.1} parent=1 // pred_region
      %52 = dma.done [#allocation5], 128
    $region25: #{tpu_custom_call.1} parent=1 // pred_fallthru
      _
    %v53 = vld [vmem:[#allocation6] sm:$0xff]
    %v54 = vld [vmem:[#allocation2] sm:$0xff]
    %v55 = vld [vmem:[#allocation4] sm:$0xff]
    %v56 = vld [vmem:[#allocation4 + $0x8] sm:$0xff]
    %vm57 = vcmask 130048
    %v59 = vsel %vm57, %v55, 0
    %v62 = vsel %vm57, %v56, 0
    %v65 = vsel %vm57, %v54, 0
    %67 = vmatprep.subr.mxu0 0.0
    %68 = vmatpush1.xpose.msra.mxu0 %v65
    %69 = vmatprep.subr.mxu0 0.0
    %70 = vmatpush1.xpose.msra.mxu0 0.0
    %71 = vmatprep.subr.mxu0 0.0
    %72 = vmatpush1.xpose.msra.mxu0 0.0
    %73 = vmatprep.subr.mxu0 0.0
    %74 = vmatpush1.xpose.msra.mxu0 0.0
    %75 = vmatprep.subr.mxu0 0.0
    %76 = vmatpush1.xpose.msra.mxu0 0.0
    %77 = vmatprep.subr.mxu0 0.0
    %78 = vmatpush1.xpose.msra.mxu0 0.0
    %79 = vmatprep.subr.mxu0 0.0
    %80 = vmatpush1.xpose.msra.mxu0 0.0
    %81 = vmatprep.subr.mxu0 0.0
    %82 = vmatpush1.xpose.msra.mxu0 0.0
    %83 = vmatprep.subr.mxu0 0.0
    %84 = vmatpush1.xpose.msra.mxu0 0.0
    %85 = vmatprep.subr.mxu0 0.0
    %86 = vmatpush1.xpose.msra.mxu0 0.0
    %87 = vmatprep.subr.mxu0 0.0
    %88 = vmatpush1.xpose.msra.mxu0 0.0
    %89 = vmatprep.subr.mxu0 0.0
    %90 = vmatpush1.xpose.msra.mxu0 0.0
    %91 = vmatprep.subr.mxu0 0.0
    %92 = vmatpush1.xpose.msra.mxu0 0.0
    %93 = vmatprep.subr.mxu0 0.0
    %94 = vmatpush1.xpose.msra.mxu0 0.0
    %95 = vmatprep.subr.mxu0 0.0
    %96 = vmatpush1.xpose.msra.mxu0 0.0
    %97 = vmatprep.subr.mxu0 0.0
    %98 = vmatpush1.xpose.msra.mxu0 0.0
    %99 = vmatprep.subr.mxu0 0.0
    %100 = vmatpush1.xpose.msra.mxu0 0.0
    %101 = vmatprep.subr.mxu0 0.0
    %102 = vmatpush1.xpose.msra.mxu0 0.0
    %103 = vmatprep.subr.mxu0 0.0
    %104 = vmatpush1.xpose.msra.mxu0 0.0
    %105 = vmatprep.subr.mxu0 0.0
    %106 = vmatpush1.xpose.msra.mxu0 0.0
    %107 = vmatprep.subr.mxu0 0.0
    %108 = vmatpush1.xpose.msra.mxu0 0.0
    %109 = vmatprep.subr.mxu0 0.0
    %110 = vmatpush1.xpose.msra.mxu0 0.0
    %111 = vmatprep.subr.mxu0 0.0
    %112 = vmatpush1.xpose.msra.mxu0 0.0
    %113 = vmatprep.subr.mxu0 0.0
    %114 = vmatpush1.xpose.msra.mxu0 0.0
    %115 = vmatprep.subr.mxu0 0.0
    %116 = vmatpush1.xpose.msra.mxu0 0.0
    %117 = vmatprep.subr.mxu0 0.0
    %118 = vmatpush1.xpose.msra.mxu0 0.0
    %119 = vmatprep.subr.mxu0 0.0
    %120 = vmatpush1.xpose.msra.mxu0 0.0
    %121 = vmatprep.subr.mxu0 0.0
    %122 = vmatpush1.xpose.msra.mxu0 0.0
    %123 = vmatprep.subr.mxu0 0.0
    %124 = vmatpush1.xpose.msra.mxu0 0.0
    %125 = vmatprep.subr.mxu0 0.0
    %126 = vmatpush1.xpose.msra.mxu0 0.0
    %127 = vmatprep.subr.mxu0 0.0
    %128 = vmatpush1.xpose.msra.mxu0 0.0
    %129 = vmatprep.subr.mxu0 0.0
    %130 = vmatpush1.xpose.msra.mxu0 0.0
    %131 = vmatprep.mubr.f32.mxu0 0.0
    %132 = vmatmul.mubr.f32.gmra.mrb[0].mxu0 %v59
    %v133 = vpop.f32.mrb[0].mxu0
    %v134 = vadd.f32 0.0, %v133
    %v135 = vpop.f32.mrb[0].mxu0
    %136 = vmatprep.mubr.f32.mxu0 0.0
    %137 = vmatmul.mubr.f32.gmra.mrb[0].mxu0 %v62
    %v138 = vpop.f32.mrb[0].mxu0
    %v139 = vadd.f32 0.0, %v138
    %v140 = vpop.f32.mrb[0].mxu0
    %141 = vdwg.mxu0
    %142 = vxpose.xlu0.b32.start [1/16] %v53, 128
    %143 = vxpose.xlu0.b32.cont [2/16] 0.0, 128
    %144 = vxpose.xlu0.b32.cont [3/16] 0.0, 128
    %145 = vxpose.xlu0.b32.cont [4/16] 0.0, 128
    %146 = vxpose.xlu0.b32.cont [5/16] 0.0, 128
    %147 = vxpose.xlu0.b32.cont [6/16] 0.0, 128
    %148 = vxpose.xlu0.b32.cont [7/16] 0.0, 128
    %149 = vxpose.xlu0.b32.cont [8/16] 0.0, 128
    %150 = vxpose.xlu0.b32.cont [9/16] 0.0, 128
    %151 = vxpose.xlu0.b32.cont [10/16] 0.0, 128
    %152 = vxpose.xlu0.b32.cont [11/16] 0.0, 128
    %153 = vxpose.xlu0.b32.cont [12/16] 0.0, 128
    %154 = vxpose.xlu0.b32.cont [13/16] 0.0, 128
    %155 = vxpose.xlu0.b32.cont [14/16] 0.0, 128
    %156 = vxpose.xlu0.b32.cont [15/16] 0.0, 128
    %157 = vxpose.xlu0.b32.end [16/16] 0.0, 128
    %v158 = vpop.trf.xlu0
    %v159 = vpop.trf.xlu0
    %v160 = vpop.trf.xlu0
    %v161 = vpop.trf.xlu0
    %v162 = vpop.trf.xlu0
    %v163 = vpop.trf.xlu0
    %v164 = vpop.trf.xlu0
    %v165 = vpop.trf.xlu0
    %v166 = vpop.trf.xlu0
    %v167 = vpop.trf.xlu0
    %v168 = vpop.trf.xlu0
    %v169 = vpop.trf.xlu0
    %v170 = vpop.trf.xlu0
    %v171 = vpop.trf.xlu0
    %v172 = vpop.trf.xlu0
    %v173 = vpop.trf.xlu0
    %vm174 = vcmask 64512
    %v176 = vsel %vm174, %v158, 0
    %v179 = vsel %vm174, %v159, 0
    %v182 = vsel %vm174, %v160, 0
    %v185 = vsel %vm174, %v161, 0
    %v188 = vsel %vm174, %v134, 0
    %v191 = vsel %vm174, %v139, 0
    %193 = vmatprep.subr.mxu0 0.0
    %194 = vmatpush1.xpose.msra.mxu0 %v188
    %195 = vmatprep.subr.mxu0 0.0
    %196 = vmatpush1.xpose.msra.mxu0 %v191
    %197 = vmatprep.subr.mxu0 0.0
    %198 = vmatpush1.xpose.msra.mxu0 0.0
    %199 = vmatprep.subr.mxu0 0.0
    %200 = vmatpush1.xpose.msra.mxu0 0.0
    %201 = vmatprep.subr.mxu0 0.0
    %202 = vmatpush1.xpose.msra.mxu0 0.0
    %203 = vmatprep.subr.mxu0 0.0
    %204 = vmatpush1.xpose.msra.mxu0 0.0
    %205 = vmatprep.subr.mxu0 0.0
    %206 = vmatpush1.xpose.msra.mxu0 0.0
    %207 = vmatprep.subr.mxu0 0.0
    %208 = vmatpush1.xpose.msra.mxu0 0.0
    %209 = vmatprep.subr.mxu0 0.0
    %210 = vmatpush1.xpose.msra.mxu0 0.0
    %211 = vmatprep.subr.mxu0 0.0
    %212 = vmatpush1.xpose.msra.mxu0 0.0
    %213 = vmatprep.subr.mxu0 0.0
    %214 = vmatpush1.xpose.msra.mxu0 0.0
    %215 = vmatprep.subr.mxu0 0.0
    %216 = vmatpush1.xpose.msra.mxu0 0.0
    %217 = vmatprep.subr.mxu0 0.0
    %218 = vmatpush1.xpose.msra.mxu0 0.0
    %219 = vmatprep.subr.mxu0 0.0
    %220 = vmatpush1.xpose.msra.mxu0 0.0
    %221 = vmatprep.subr.mxu0 0.0
    %222 = vmatpush1.xpose.msra.mxu0 0.0
    %223 = vmatprep.subr.mxu0 0.0
    %224 = vmatpush1.xpose.msra.mxu0 0.0
    %225 = vmatprep.subr.mxu0 0.0
    %226 = vmatpush1.xpose.msra.mxu0 0.0
    %227 = vmatprep.subr.mxu0 0.0
    %228 = vmatpush1.xpose.msra.mxu0 0.0
    %229 = vmatprep.subr.mxu0 0.0
    %230 = vmatpush1.xpose.msra.mxu0 0.0
    %231 = vmatprep.subr.mxu0 0.0
    %232 = vmatpush1.xpose.msra.mxu0 0.0
    %233 = vmatprep.subr.mxu0 0.0
    %234 = vmatpush1.xpose.msra.mxu0 0.0
    %235 = vmatprep.subr.mxu0 0.0
    %236 = vmatpush1.xpose.msra.mxu0 0.0
    %237 = vmatprep.subr.mxu0 0.0
    %238 = vmatpush1.xpose.msra.mxu0 0.0
    %239 = vmatprep.subr.mxu0 0.0
    %240 = vmatpush1.xpose.msra.mxu0 0.0
    %241 = vmatprep.subr.mxu0 0.0
    %242 = vmatpush1.xpose.msra.mxu0 0.0
    %243 = vmatprep.subr.mxu0 0.0
    %244 = vmatpush1.xpose.msra.mxu0 0.0
    %245 = vmatprep.subr.mxu0 0.0
    %246 = vmatpush1.xpose.msra.mxu0 0.0
    %247 = vmatprep.subr.mxu0 0.0
    %248 = vmatpush1.xpose.msra.mxu0 0.0
    %249 = vmatprep.subr.mxu0 0.0
    %250 = vmatpush1.xpose.msra.mxu0 0.0
    %251 = vmatprep.subr.mxu0 0.0
    %252 = vmatpush1.xpose.msra.mxu0 0.0
    %253 = vmatprep.subr.mxu0 0.0
    %254 = vmatpush1.xpose.msra.mxu0 0.0
    %255 = vmatprep.subr.mxu0 0.0
    %256 = vmatpush1.xpose.msra.mxu0 0.0
    %257 = vmatprep.mubr.f32.mxu0 0.0
    %258 = vmatmul.mubr.f32.gmra.mrb[0].mxu0 %v176
    %v259 = vpop.f32.mrb[0].mxu0
    %v260 = vadd.f32 0.0, %v259
    %v261 = vpop.f32.mrb[0].mxu0
    %262 = vmatprep.mubr.f32.mxu0 0.0
    %263 = vmatmul.mubr.f32.gmra.mrb[0].mxu0 %v179
    %v264 = vpop.f32.mrb[0].mxu0
    %v265 = vadd.f32 0.0, %v264
    %v266 = vpop.f32.mrb[0].mxu0
    %267 = vmatprep.mubr.f32.mxu0 0.0
    %268 = vmatmul.mubr.f32.gmra.mrb[0].mxu0 %v182
    %v269 = vpop.f32.mrb[0].mxu0
    %v270 = vadd.f32 0.0, %v269
    %v271 = vpop.f32.mrb[0].mxu0
    %272 = vmatprep.mubr.f32.mxu0 0.0
    %273 = vmatmul.mubr.f32.gmra.mrb[0].mxu0 %v185
    %v274 = vpop.f32.mrb[0].mxu0
    %v275 = vadd.f32 0.0, %v274
    %v276 = vpop.f32.mrb[0].mxu0
    %277 = vdwg.mxu0
    %278 = vst.msk [vmem:[%s3] sm:$0xff] %vm57, %v260
    %279 = vst.msk [vmem:[%s3 + $0x8] sm:$0xff] %vm57, %v265
    %280 = vst.msk [vmem:[%s3 + $0x10] sm:$0xff] %vm57, %v270
    %281 = vst.msk [vmem:[%s3 + $0x18] sm:$0xff] %vm57, %v275
    %s282 = scalar_lea.vmem [#allocation2], 8
    %v283 = vld [vmem:[%s282] sm:$0xff]
    %s284 = scalar_lea.vmem [#allocation4], 16
    %v285 = vld [vmem:[%s284] sm:$0xff]
    %v286 = vld [vmem:[%s284 + $0x8] sm:$0xff]
    %v288 = vsel %vm57, %v285, 0
    %v291 = vsel %vm57, %v286, 0
    %v294 = vsel %vm57, %v283, 0
    %296 = vmatprep.subr.mxu0 0.0
    %297 = vmatpush1.xpose.msra.mxu0 %v294
    %298 = vmatprep.subr.mxu0 0.0
    %299 = vmatpush1.xpose.msra.mxu0 0.0
    %300 = vmatprep.subr.mxu0 0.0
    %301 = vmatpush1.xpose.msra.mxu0 0.0
    %302 = vmatprep.subr.mxu0 0.0
    %303 = vmatpush1.xpose.msra.mxu0 0.0
    %304 = vmatprep.subr.mxu0 0.0
    %305 = vmatpush1.xpose.msra.mxu0 0.0
    %306 = vmatprep.subr.mxu0 0.0
    %307 = vmatpush1.xpose.msra.mxu0 0.0
    %308 = vmatprep.subr.mxu0 0.0
    %309 = vmatpush1.xpose.msra.mxu0 0.0
    %310 = vmatprep.subr.mxu0 0.0
    %311 = vmatpush1.xpose.msra.mxu0 0.0
    %312 = vmatprep.subr.mxu0 0.0
    %313 = vmatpush1.xpose.msra.mxu0 0.0
    %314 = vmatprep.subr.mxu0 0.0
    %315 = vmatpush1.xpose.msra.mxu0 0.0
    %316 = vmatprep.subr.mxu0 0.0
    %317 = vmatpush1.xpose.msra.mxu0 0.0
    %318 = vmatprep.subr.mxu0 0.0
    %319 = vmatpush1.xpose.msra.mxu0 0.0
    %320 = vmatprep.subr.mxu0 0.0
    %321 = vmatpush1.xpose.msra.mxu0 0.0
    %322 = vmatprep.subr.mxu0 0.0
    %323 = vmatpush1.xpose.msra.mxu0 0.0
    %324 = vmatprep.subr.mxu0 0.0
    %325 = vmatpush1.xpose.msra.mxu0 0.0
    %326 = vmatprep.subr.mxu0 0.0
    %327 = vmatpush1.xpose.msra.mxu0 0.0
    %328 = vmatprep.subr.mxu0 0.0
    %329 = vmatpush1.xpose.msra.mxu0 0.0
    %330 = vmatprep.subr.mxu0 0.0
    %331 = vmatpush1.xpose.msra.mxu0 0.0
    %332 = vmatprep.subr.mxu0 0.0
    %333 = vmatpush1.xpose.msra.mxu0 0.0
    %334 = vmatprep.subr.mxu0 0.0
    %335 = vmatpush1.xpose.msra.mxu0 0.0
    %336 = vmatprep.subr.mxu0 0.0
    %337 = vmatpush1.xpose.msra.mxu0 0.0
    %338 = vmatprep.subr.mxu0 0.0
    %339 = vmatpush1.xpose.msra.mxu0 0.0
    %340 = vmatprep.subr.mxu0 0.0
    %341 = vmatpush1.xpose.msra.mxu0 0.0
    %342 = vmatprep.subr.mxu0 0.0
    %343 = vmatpush1.xpose.msra.mxu0 0.0
    %344 = vmatprep.subr.mxu0 0.0
    %345 = vmatpush1.xpose.msra.mxu0 0.0
    %346 = vmatprep.subr.mxu0 0.0
    %347 = vmatpush1.xpose.msra.mxu0 0.0
    %348 = vmatprep.subr.mxu0 0.0
    %349 = vmatpush1.xpose.msra.mxu0 0.0
    %350 = vmatprep.subr.mxu0 0.0
    %351 = vmatpush1.xpose.msra.mxu0 0.0
    %352 = vmatprep.subr.mxu0 0.0
    %353 = vmatpush1.xpose.msra.mxu0 0.0
    %354 = vmatprep.subr.mxu0 0.0
    %355 = vmatpush1.xpose.msra.mxu0 0.0
    %356 = vmatprep.subr.mxu0 0.0
    %357 = vmatpush1.xpose.msra.mxu0 0.0
    %358 = vmatprep.subr.mxu0 0.0
    %359 = vmatpush1.xpose.msra.mxu0 0.0
    %360 = vmatprep.mubr.f32.mxu0 0.0
    %361 = vmatmul.mubr.f32.gmra.mrb[0].mxu0 %v288
    %v362 = vpop.f32.mrb[0].mxu0
    %v363 = vadd.f32 0.0, %v362
    %v364 = vpop.f32.mrb[0].mxu0
    %365 = vmatprep.mubr.f32.mxu0 0.0
    %366 = vmatmul.mubr.f32.gmra.mrb[0].mxu0 %v291
    %v367 = vpop.f32.mrb[0].mxu0
    %v368 = vadd.f32 0.0, %v367
    %v369 = vpop.f32.mrb[0].mxu0
    %370 = vdwg.mxu0
    %v372 = vsel %vm174, %v363, 0
    %v375 = vsel %vm174, %v368, 0
    %377 = vmatprep.subr.mxu0 0.0
    %378 = vmatpush1.xpose.msra.mxu0 %v372
    %379 = vmatprep.subr.mxu0 0.0
    %380 = vmatpush1.xpose.msra.mxu0 %v375
    %381 = vmatprep.subr.mxu0 0.0
    %382 = vmatpush1.xpose.msra.mxu0 0.0
    %383 = vmatprep.subr.mxu0 0.0
    %384 = vmatpush1.xpose.msra.mxu0 0.0
    %385 = vmatprep.subr.mxu0 0.0
    %386 = vmatpush1.xpose.msra.mxu0 0.0
    %387 = vmatprep.subr.mxu0 0.0
    %388 = vmatpush1.xpose.msra.mxu0 0.0
    %389 = vmatprep.subr.mxu0 0.0
    %390 = vmatpush1.xpose.msra.mxu0 0.0
    %391 = vmatprep.subr.mxu0 0.0
    %392 = vmatpush1.xpose.msra.mxu0 0.0
    %393 = vmatprep.subr.mxu0 0.0
    %394 = vmatpush1.xpose.msra.mxu0 0.0
    %395 = vmatprep.subr.mxu0 0.0
    %396 = vmatpush1.xpose.msra.mxu0 0.0
    %397 = vmatprep.subr.mxu0 0.0
    %398 = vmatpush1.xpose.msra.mxu0 0.0
    %399 = vmatprep.subr.mxu0 0.0
    %400 = vmatpush1.xpose.msra.mxu0 0.0
    %401 = vmatprep.subr.mxu0 0.0
    %402 = vmatpush1.xpose.msra.mxu0 0.0
    %403 = vmatprep.subr.mxu0 0.0
    %404 = vmatpush1.xpose.msra.mxu0 0.0
    %405 = vmatprep.subr.mxu0 0.0
    %406 = vmatpush1.xpose.msra.mxu0 0.0
    %407 = vmatprep.subr.mxu0 0.0
    %408 = vmatpush1.xpose.msra.mxu0 0.0
    %409 = vmatprep.subr.mxu0 0.0
    %410 = vmatpush1.xpose.msra.mxu0 0.0
    %411 = vmatprep.subr.mxu0 0.0
    %412 = vmatpush1.xpose.msra.mxu0 0.0
    %413 = vmatprep.subr.mxu0 0.0
    %414 = vmatpush1.xpose.msra.mxu0 0.0
    %415 = vmatprep.subr.mxu0 0.0
    %416 = vmatpush1.xpose.msra.mxu0 0.0
    %417 = vmatprep.subr.mxu0 0.0
    %418 = vmatpush1.xpose.msra.mxu0 0.0
    %419 = vmatprep.subr.mxu0 0.0
    %420 = vmatpush1.xpose.msra.mxu0 0.0
    %421 = vmatprep.subr.mxu0 0.0
    %422 = vmatpush1.xpose.msra.mxu0 0.0
    %423 = vmatprep.subr.mxu0 0.0
    %424 = vmatpush1.xpose.msra.mxu0 0.0
    %425 = vmatprep.subr.mxu0 0.0
    %426 = vmatpush1.xpose.msra.mxu0 0.0
    %427 = vmatprep.subr.mxu0 0.0
    %428 = vmatpush1.xpose.msra.mxu0 0.0
    %429 = vmatprep.subr.mxu0 0.0
    %430 = vmatpush1.xpose.msra.mxu0 0.0
    %431 = vmatprep.subr.mxu0 0.0
    %432 = vmatpush1.xpose.msra.mxu0 0.0
    %433 = vmatprep.subr.mxu0 0.0
    %434 = vmatpush1.xpose.msra.mxu0 0.0
    %435 = vmatprep.subr.mxu0 0.0
    %436 = vmatpush1.xpose.msra.mxu0 0.0
    %437 = vmatprep.subr.mxu0 0.0
    %438 = vmatpush1.xpose.msra.mxu0 0.0
    %439 = vmatprep.subr.mxu0 0.0
    %440 = vmatpush1.xpose.msra.mxu0 0.0
    %441 = vmatprep.mubr.f32.mxu0 0.0
    %442 = vmatmul.mubr.f32.gmra.mrb[0].mxu0 %v176
    %v443 = vpop.f32.mrb[0].mxu0
    %v444 = vadd.f32 0.0, %v443
    %v445 = vpop.f32.mrb[0].mxu0
    %446 = vmatprep.mubr.f32.mxu0 0.0
    %447 = vmatmul.mubr.f32.gmra.mrb[0].mxu0 %v179
    %v448 = vpop.f32.mrb[0].mxu0
    %v449 = vadd.f32 0.0, %v448
    %v450 = vpop.f32.mrb[0].mxu0
    %451 = vmatprep.mubr.f32.mxu0 0.0
    %452 = vmatmul.mubr.f32.gmra.mrb[0].mxu0 %v182
    %v453 = vpop.f32.mrb[0].mxu0
    %v454 = vadd.f32 0.0, %v453
    %v455 = vpop.f32.mrb[0].mxu0
    %456 = vmatprep.mubr.f32.mxu0 0.0
    %457 = vmatmul.mubr.f32.gmra.mrb[0].mxu0 %v185
    %v458 = vpop.f32.mrb[0].mxu0
    %v459 = vadd.f32 0.0, %v458
    %v460 = vpop.f32.mrb[0].mxu0
    %461 = vdwg.mxu0
    %s462 = scalar_lea.vmem %s3, 32
    %463 = vst.msk [vmem:[%s462] sm:$0xff] %vm57, %v444
    %464 = vst.msk [vmem:[%s462 + $0x8] sm:$0xff] %vm57, %v449
    %465 = vst.msk [vmem:[%s462 + $0x10] sm:$0xff] %vm57, %v454
    %466 = vst.msk [vmem:[%s462 + $0x18] sm:$0xff] %vm57, %v459
    // Predicated region
    $region26: #{tpu_custom_call.1} parent=1 // pred_check
      _
    $region27: #{tpu_custom_call.1} parent=1 // pred_check_branch
      %468 = sbr.rel (0) target = $region29
    $region28: #{tpu_custom_call.1} parent=1 // pred_region
      _
    $region29: #{tpu_custom_call.1} parent=1 // pred_fallthru
      _
    // Predicated region
    $region30: #{tpu_custom_call.1} parent=1 // pred_check
      _
    $region31: #{tpu_custom_call.1} parent=1 // pred_check_branch
      %470 = sbr.rel (0) target = $region33
    $region32: #{tpu_custom_call.1} parent=1 // pred_region
      _
    $region33: #{tpu_custom_call.1} parent=1 // pred_fallthru
      _
    %471 = vsyncpa [#allocation3], 1
    %472 = vsyncpa [#allocation5], 1

</llo_original>
